<compile_context>
chip_gen: v7x
topology: tpu7x:2x2x1
jax: 0.10.0
libtpu: 0.0.40
codegen_flags: <defaults>
</compile_context>

<pallas_src>
import functools

import jax
import jax.numpy as jnp
from jax import lax
from jax.experimental import pallas as pl
from jax.experimental.pallas import tpu as pltpu

_LANES = 128
_TARGET_BLOCK_BYTES = 4 * 1024 * 1024   # combined x+t HBM bytes per grid step
_MAX_BLOCK_ROWS = 4096                  # keeps worst-case VMEM well under the limit
_ROW_ALIGN = 32                         # sublane packing factor for int8/bool blocks
_VMEM_LIMIT_BYTES = 32 * 1024 * 1024    # == v6e/v7x default; raises v5e's 16 MiB

# Fall back gracefully if this jax version spells the enum differently.
_CORE_PARALLEL = getattr(pltpu, "CORE_PARALLEL", "parallel")


@functools.lru_cache(maxsize=1)
def _tensorcore_count():
    """Best-effort TensorCores-per-device (v7x: 2, v5e/v6e: 1). Defaults to 1."""
    try:
        info = pltpu.get_tpu_info()
    except Exception:
        return 1
    for attr in ("num_cores", "core_count", "num_tensorcores",
                 "tensor_cores_per_chip", "num_tensor_cores"):
        v = getattr(info, attr, None)
        if isinstance(v, int) and v >= 1:
            return min(v, 2)
    return 1


def _make_kernel(block_rows, steps, total_rows, full_blocks, needs_mask):
    """Accumulates per-lane partial sums of tanh(x/2), tanh(x/2)*t and t."""

    def kernel(x_ref, t_ref, a_ref, b_ref, c_ref):
        c = pl.program_id(0)          # chunk (TensorCore) axis
        k = pl.program_id(1)          # sequential reduction step within chunk

        @pl.when(k == 0)
        def _():
            a_ref[...] = jnp.zeros_like(a_ref)
            b_ref[...] = jnp.zeros_like(b_ref)
            c_ref[...] = jnp.zeros_like(c_ref)

        blk = c * steps + k           # logical block index (may be a phantom)

        x = x_ref[...].astype(jnp.float32)
        th = jnp.tanh(0.5 * x)        # sigmoid(x) = 0.5*tanh(x/2) + 0.5 (affine in epilogue)
        t = t_ref[...].astype(jnp.float32)

        def accumulate(th_v, t_v):
            # Keep the lane axis; only reduce sublanes (VALU vreg adds) and
            # accumulate straight into the VMEM-resident per-chunk outputs.
            a_ref[...] += jnp.sum(th_v, axis=0, keepdims=True)
            b_ref[...] += jnp.sum(th_v * t_v, axis=0, keepdims=True)
            c_ref[...] += jnp.sum(t_v, axis=0, keepdims=True)

        if needs_mask:
            # Hot path: fully in-bounds blocks, no per-element masking.
            @pl.when(blk < full_blocks)
            def _():
                accumulate(th, t)

            # Cold path: the single ragged tail block (rows >= total_rows hold
            # undefined data) and any phantom blocks of the last chunk.
            @pl.when(blk >= full_blocks)
            def _():
                valid = total_rows - blk * block_rows        # <= 0 for phantoms
                rows = lax.broadcasted_iota(jnp.int32, (block_rows, _LANES), 0)
                m = rows < valid
                accumulate(jnp.where(m, th, 0.0), jnp.where(m, t, 0.0))
        else:
            accumulate(th, t)

    return kernel


@functools.partial(jax.jit, static_argnames=("max_block_rows",))
def dice_loss(inputs, targets, smooth=1.0, *, max_block_rows=None):
    """Pallas implementation of DiceLoss.forward. Returns a float32 scalar."""
    n = inputs.size
    smooth = jnp.asarray(smooth, jnp.float32)
    if n == 0:
        return jnp.float32(0.0)       # (0 + smooth)/(0 + smooth) -> loss 0

    x = jnp.reshape(inputs, (-1,))
    t = jnp.reshape(targets, (-1,))

    # Lane padding only (<=127 zeros); skipped when already a multiple of 128.
    pad = (-n) % _LANES
    if pad:
        x = jnp.pad(x, (0, pad))
        t = jnp.pad(t, (0, pad))
    total_rows = (n + pad) // _LANES
    x = x.reshape(total_rows, _LANES)
    t = t.reshape(total_rows, _LANES)

    # --- block sizing in bytes, not rows -------------------------------------
    itemsz = jnp.dtype(inputs.dtype).itemsize + jnp.dtype(targets.dtype).itemsize
    target_rows = _TARGET_BLOCK_BYTES // (_LANES * itemsz)
    cap = _MAX_BLOCK_ROWS if max_block_rows is None else max(1, int(max_block_rows))
    target_rows = min(target_rows, cap, _MAX_BLOCK_ROWS)
    target_rows = max(_ROW_ALIGN, (target_rows // _ROW_ALIGN) * _ROW_ALIGN)
    # Either one block equal to the full array (always layout-legal), or a
    # multiple-of-32-row block with the ragged tail masked in-kernel.
    block_rows = total_rows if total_rows <= target_rows else target_rows

    n_blocks = pl.cdiv(total_rows, block_rows)

    # Split across TensorCores only when the chip actually has more than one.
    num_chunks = min(_tensorcore_count(), n_blocks)
    steps = pl.cdiv(n_blocks, num_chunks)

    full_blocks = n_blocks if total_rows % block_rows == 0 else n_blocks - 1
    needs_mask = full_blocks < num_chunks * steps

    kernel = _make_kernel(block_rows=block_rows, steps=steps,
                          total_rows=total_rows, full_blocks=full_blocks,
                          needs_mask=needs_mask)

    def in_map(c, k):
        # Clamp phantom trailing blocks (last chunk) onto the final real block;
        # the kernel masks them to zero, so we never rely on OOB block indices.
        return (jnp.minimum(c * steps + k, n_blocks - 1), 0)

    # Squeezed leading dim -> kernel sees a plain lane-dense (1, 128) block,
    # and the block's last two dims always equal the array's (no (8,128) issue).
    out_spec = pl.BlockSpec((None, 1, _LANES), lambda c, k: (c, 0, 0))
    out_shape = jax.ShapeDtypeStruct((num_chunks, 1, _LANES), jnp.float32)

    if num_chunks > 1:
        dims = (_CORE_PARALLEL, "arbitrary")
    else:
        dims = ("arbitrary", "arbitrary")

    a_out, b_out, c_out = pl.pallas_call(
        kernel,
        out_shape=(out_shape, out_shape, out_shape),
        grid_spec=pltpu.PrefetchScalarGridSpec(
            num_scalar_prefetch=0,
            grid=(num_chunks, steps),
            in_specs=[
                pl.BlockSpec((block_rows, _LANES), in_map),
                pl.BlockSpec((block_rows, _LANES), in_map),
            ],
            out_specs=(out_spec, out_spec, out_spec),
        ),
        compiler_params=pltpu.CompilerParams(
            dimension_semantics=dims,
            allow_input_fusion=[True, True],
            vmem_limit_bytes=_VMEM_LIMIT_BYTES,
        ),
    )(x, t)

    # Epilogue: apply the hoisted sigmoid affine once, using the exact count n
    # (zero-padded / masked elements contributed exactly 0 to A, B, C).
    a = jnp.sum(a_out)                       # sum tanh(x/2)
    b = jnp.sum(b_out)                       # sum tanh(x/2) * t
    c = jnp.sum(c_out)                       # sum t
    inter = 0.5 * (b + c)                    # sum sigmoid(x) * t
    sum_s = 0.5 * (a + n)                    # sum sigmoid(x)
    dice = (2.0 * inter + smooth) / (sum_s + c + smooth)
    return (1.0 - dice).astype(jnp.float32)


def _dice_loss_ref(inputs, targets, smooth=1.0):
    s = jax.nn.sigmoid(inputs.astype(jnp.float32)).reshape(-1)
    t = targets.astype(jnp.float32).reshape(-1)
    inter = jnp.sum(s * t)
    dice = (2.0 * inter + smooth) / (jnp.sum(s) + jnp.sum(t) + smooth)
    return 1.0 - dice


if __name__ == "__main__":
    key = jax.random.PRNGKey(0)
    k1, k2, k3, k4, k5, k6 = jax.random.split(key, 6)

    # Primary: NCHW logits / binary mask (n = 2048, multiple of 128 -> no pad).
    x = jax.random.normal(k1, (2, 4, 16, 16), dtype=jnp.float32)
    tgt = (jax.random.uniform(k2, (2, 4, 16, 16)) > 0.5).astype(jnp.float32)
    loss = jax.block_until_ready(dice_loss(x, tgt, smooth=1.0))
    ref = _dice_loss_ref(x, tgt, smooth=1.0)
    assert jnp.allclose(loss, ref, rtol=1e-5, atol=1e-5), (loss, ref)

    # Ragged element count (1155 elements -> 125-element zero pad), single block.
    x2 = jax.random.normal(k3, (3, 5, 7, 11), dtype=jnp.float32)
    tgt2 = (jax.random.uniform(k4, (3, 5, 7, 11)) > 0.5).astype(jnp.float32)
    loss2 = jax.block_until_ready(dice_loss(x2, tgt2, smooth=1.0))
    ref2 = _dice_loss_ref(x2, tgt2, smooth=1.0)
    assert jnp.allclose(loss2, ref2, rtol=1e-5, atol=1e-5), (loss2, ref2)

    # Force tiny blocks to exercise the multi-step grid, lane padding, the
    # masked partial tail block, and (on multi-TC chips) the chunk split.
    x3 = jax.random.normal(k5, (2, 4, 33, 17), dtype=jnp.bfloat16)
    tgt3 = (jax.random.uniform(k6, (2, 4, 33, 17)) > 0.5).astype(jnp.bfloat16)
    loss3 = jax.block_until_ready(dice_loss(x3, tgt3, smooth=1.0, max_block_rows=32))
    ref3 = _dice_loss_ref(x3, tgt3, smooth=1.0)
    assert jnp.allclose(loss3, ref3, rtol=1e-4, atol=1e-4), (loss3, ref3)

    print("KERNEL_OK")
</pallas_src>

<mosaic_0001>
module attributes {stable_mosaic.version = 11 : i64} {
  func.func @kernel(%arg0: i32, %arg1: i32, %arg2: memref<16x128xf32, #tpu.memory_space<vmem>>, %arg3: memref<16x128xf32, #tpu.memory_space<vmem>>, %arg4: memref<1x1x128xf32, #tpu.memory_space<vmem>>, %arg5: memref<1x1x128xf32, #tpu.memory_space<vmem>>, %arg6: memref<1x1x128xf32, #tpu.memory_space<vmem>>) attributes {dimension_semantics = [#tpu.dimension_semantics<arbitrary>, #tpu.dimension_semantics<arbitrary>], iteration_bounds = array<i64: 1, 1>, scalar_prefetch = 0 : i64, scratch_operands = 0 : i64, tpu.core_type = #tpu.core_type<tc>, window_params = [{transform_indices = @transform_0, window_bounds = array<i64: 16, 128>}, {transform_indices = @transform_1, window_bounds = array<i64: 16, 128>}, {transform_indices = @transform_2, window_bounds = array<i64: 1, 1, 128>}, {transform_indices = @transform_3, window_bounds = array<i64: 1, 1, 128>}, {transform_indices = @transform_4, window_bounds = array<i64: 1, 1, 128>}]} {
    %c0_i32 = arith.constant 0 : i32
    %0 = arith.cmpi eq, %arg1, %c0_i32 : i32
    %1 = arith.extui %0 : i1 to i32
    %c0_i32_0 = arith.constant 0 : i32
    %2 = arith.cmpi ne, %1, %c0_i32_0 : i32
    scf.if %2 {
      %cst_25 = arith.constant 0.000000e+00 : f32
      %33 = vector.broadcast %cst_25 : f32 to vector<1x128xf32>
      %c0_26 = arith.constant 0 : index
      %c0_27 = arith.constant 0 : index
      %c0_28 = arith.constant 0 : index
      %34 = vector.load %arg4[%c0_26, %c0_27, %c0_28] : memref<1x1x128xf32, #tpu.memory_space<vmem>>, vector<1x1x128xf32>
      %35 = vector.shape_cast %34 : vector<1x1x128xf32> to vector<1x128xf32>
      %36 = vector.shape_cast %33 : vector<1x128xf32> to vector<1x1x128xf32>
      tpu.vector_store %arg4[%c0_26, %c0_27, %c0_28], %36 {strides = array<i32>} : memref<1x1x128xf32, #tpu.memory_space<vmem>>, vector<1x1x128xf32>,
      %cst_29 = arith.constant 0.000000e+00 : f32
      %37 = vector.broadcast %cst_29 : f32 to vector<1x128xf32>
      %c0_30 = arith.constant 0 : index
      %c0_31 = arith.constant 0 : index
      %c0_32 = arith.constant 0 : index
      %38 = vector.load %arg5[%c0_30, %c0_31, %c0_32] : memref<1x1x128xf32, #tpu.memory_space<vmem>>, vector<1x1x128xf32>
      %39 = vector.shape_cast %38 : vector<1x1x128xf32> to vector<1x128xf32>
      %40 = vector.shape_cast %37 : vector<1x128xf32> to vector<1x1x128xf32>
      tpu.vector_store %arg5[%c0_30, %c0_31, %c0_32], %40 {strides = array<i32>} : memref<1x1x128xf32, #tpu.memory_space<vmem>>, vector<1x1x128xf32>,
      %cst_33 = arith.constant 0.000000e+00 : f32
      %41 = vector.broadcast %cst_33 : f32 to vector<1x128xf32>
      %c0_34 = arith.constant 0 : index
      %c0_35 = arith.constant 0 : index
      %c0_36 = arith.constant 0 : index
      %42 = vector.load %arg6[%c0_34, %c0_35, %c0_36] : memref<1x1x128xf32, #tpu.memory_space<vmem>>, vector<1x1x128xf32>
      %43 = vector.shape_cast %42 : vector<1x1x128xf32> to vector<1x128xf32>
      %44 = vector.shape_cast %41 : vector<1x128xf32> to vector<1x1x128xf32>
      tpu.vector_store %arg6[%c0_34, %c0_35, %c0_36], %44 {strides = array<i32>} : memref<1x1x128xf32, #tpu.memory_space<vmem>>, vector<1x1x128xf32>,
    } else {
    }
    %c0 = arith.constant 0 : index
    %c0_1 = arith.constant 0 : index
    %3 = vector.load %arg2[%c0, %c0_1] : memref<16x128xf32, #tpu.memory_space<vmem>>, vector<16x128xf32>
    %cst = arith.constant 5.000000e-01 : f32
    %4 = vector.broadcast %cst : f32 to vector<16x128xf32>
    %5 = arith.mulf %4, %3 : vector<16x128xf32>
    %6 = math.tanh %5 : vector<16x128xf32>
    %c0_2 = arith.constant 0 : index
    %c0_3 = arith.constant 0 : index
    %7 = vector.load %arg3[%c0_2, %c0_3] : memref<16x128xf32, #tpu.memory_space<vmem>>, vector<16x128xf32>
    %c0_4 = arith.constant 0 : index
    %c0_5 = arith.constant 0 : index
    %c0_6 = arith.constant 0 : index
    %8 = vector.load %arg4[%c0_4, %c0_5, %c0_6] : memref<1x1x128xf32, #tpu.memory_space<vmem>>, vector<1x1x128xf32>
    %9 = vector.shape_cast %8 : vector<1x1x128xf32> to vector<1x128xf32>
    %cst_7 = arith.constant dense<0.000000e+00> : vector<128xf32>
    %10 = vector.multi_reduction <add>, %6, %cst_7 [0] : vector<16x128xf32> to vector<128xf32>
    %11 = vector.shape_cast %10 : vector<128xf32> to vector<1x128xf32>
    %12 = arith.addf %9, %11 : vector<1x128xf32>
    %c0_8 = arith.constant 0 : index
    %c0_9 = arith.constant 0 : index
    %c0_10 = arith.constant 0 : index
    %13 = vector.load %arg4[%c0_8, %c0_9, %c0_10] : memref<1x1x128xf32, #tpu.memory_space<vmem>>, vector<1x1x128xf32>
    %14 = vector.shape_cast %13 : vector<1x1x128xf32> to vector<1x128xf32>
    %15 = vector.shape_cast %12 : vector<1x128xf32> to vector<1x1x128xf32>
    tpu.vector_store %arg4[%c0_8, %c0_9, %c0_10], %15 {strides = array<i32>} : memref<1x1x128xf32, #tpu.memory_space<vmem>>, vector<1x1x128xf32>,
    %c0_11 = arith.constant 0 : index
    %c0_12 = arith.constant 0 : index
    %c0_13 = arith.constant 0 : index
    %16 = vector.load %arg5[%c0_11, %c0_12, %c0_13] : memref<1x1x128xf32, #tpu.memory_space<vmem>>, vector<1x1x128xf32>
    %17 = vector.shape_cast %16 : vector<1x1x128xf32> to vector<1x128xf32>
    %18 = arith.mulf %6, %7 : vector<16x128xf32>
    %cst_14 = arith.constant dense<0.000000e+00> : vector<128xf32>
    %19 = vector.multi_reduction <add>, %18, %cst_14 [0] : vector<16x128xf32> to vector<128xf32>
    %20 = vector.shape_cast %19 : vector<128xf32> to vector<1x128xf32>
    %21 = arith.addf %17, %20 : vector<1x128xf32>
    %c0_15 = arith.constant 0 : index
    %c0_16 = arith.constant 0 : index
    %c0_17 = arith.constant 0 : index
    %22 = vector.load %arg5[%c0_15, %c0_16, %c0_17] : memref<1x1x128xf32, #tpu.memory_space<vmem>>, vector<1x1x128xf32>
    %23 = vector.shape_cast %22 : vector<1x1x128xf32> to vector<1x128xf32>
    %24 = vector.shape_cast %21 : vector<1x128xf32> to vector<1x1x128xf32>
    tpu.vector_store %arg5[%c0_15, %c0_16, %c0_17], %24 {strides = array<i32>} : memref<1x1x128xf32, #tpu.memory_space<vmem>>, vector<1x1x128xf32>,
    %c0_18 = arith.constant 0 : index
    %c0_19 = arith.constant 0 : index
    %c0_20 = arith.constant 0 : index
    %25 = vector.load %arg6[%c0_18, %c0_19, %c0_20] : memref<1x1x128xf32, #tpu.memory_space<vmem>>, vector<1x1x128xf32>
    %26 = vector.shape_cast %25 : vector<1x1x128xf32> to vector<1x128xf32>
    %cst_21 = arith.constant dense<0.000000e+00> : vector<128xf32>
    %27 = vector.multi_reduction <add>, %7, %cst_21 [0] : vector<16x128xf32> to vector<128xf32>
    %28 = vector.shape_cast %27 : vector<128xf32> to vector<1x128xf32>
    %29 = arith.addf %26, %28 : vector<1x128xf32>
    %c0_22 = arith.constant 0 : index
    %c0_23 = arith.constant 0 : index
    %c0_24 = arith.constant 0 : index
    %30 = vector.load %arg6[%c0_22, %c0_23, %c0_24] : memref<1x1x128xf32, #tpu.memory_space<vmem>>, vector<1x1x128xf32>
    %31 = vector.shape_cast %30 : vector<1x1x128xf32> to vector<1x128xf32>
    %32 = vector.shape_cast %29 : vector<1x128xf32> to vector<1x1x128xf32>
    tpu.vector_store %arg6[%c0_22, %c0_23, %c0_24], %32 {strides = array<i32>} : memref<1x1x128xf32, #tpu.memory_space<vmem>>, vector<1x1x128xf32>,
    return
  }
  func.func @transform_0(%arg0: i32, %arg1: i32) -> (i32, i32) {
    %c1_i32 = arith.constant 1 : i32
    %0 = arith.muli %arg0, %c1_i32 : i32
    %1 = arith.addi %0, %arg1 : i32
    %c0_i32 = arith.constant 0 : i32
    %2 = arith.minsi %1, %c0_i32 : i32
    %c0_i32_0 = arith.constant 0 : i32
    %c0_i32_1 = arith.constant 0 : i32
    return %2, %c0_i32_0 : i32, i32
  }
  func.func @transform_1(%arg0: i32, %arg1: i32) -> (i32, i32) {
    %c1_i32 = arith.constant 1 : i32
    %0 = arith.muli %arg0, %c1_i32 : i32
    %1 = arith.addi %0, %arg1 : i32
    %c0_i32 = arith.constant 0 : i32
    %2 = arith.minsi %1, %c0_i32 : i32
    %c0_i32_0 = arith.constant 0 : i32
    %c0_i32_1 = arith.constant 0 : i32
    return %2, %c0_i32_0 : i32, i32
  }
  func.func @transform_2(%arg0: i32, %arg1: i32) -> (i32, i32, i32) {
    %c0_i32 = arith.constant 0 : i32
    %c0_i32_0 = arith.constant 0 : i32
    %c0_i32_1 = arith.constant 0 : i32
    return %arg0, %c0_i32, %c0_i32_0 : i32, i32, i32
  }
  func.func @transform_3(%arg0: i32, %arg1: i32) -> (i32, i32, i32) {
    %c0_i32 = arith.constant 0 : i32
    %c0_i32_0 = arith.constant 0 : i32
    %c0_i32_1 = arith.constant 0 : i32
    return %arg0, %c0_i32, %c0_i32_0 : i32, i32, i32
  }
  func.func @transform_4(%arg0: i32, %arg1: i32) -> (i32, i32, i32) {
    %c0_i32 = arith.constant 0 : i32
    %c0_i32_0 = arith.constant 0 : i32
    %c0_i32_1 = arith.constant 0 : i32
    return %arg0, %c0_i32, %c0_i32_0 : i32, i32, i32
  }
}

</mosaic_0001>

<llo_original>
// kernel: dice_loss.1
$region0: #{dice_loss.1}
  #allocation0 [shape = 'u32[]', space=smem, size = 0x4, offset = 0x4, fixed_abs, tag = 'smem constant byte address 0x4 - core index']
  #allocation1 [shape = 'u32[144,128]{1,0:T(1,128)}', space=vmem, size = 0x12000, scoped, tag = 'internal scratch']
  %s0 = inlined_call_operand.vmem [shape: f32[16,128], index: 0, kind: input, shape index: {}]
  %s1 = inlined_call_operand.vmem [shape: f32[16,128], index: 1, kind: input, shape index: {}]
  %s2 = inlined_call_operand.vmem [shape: f32[1,1,128], index: 2, kind: output, shape index: {0}]
  %s3 = inlined_call_operand.vmem [shape: f32[1,1,128], index: 3, kind: output, shape index: {1}]
  %s4 = inlined_call_operand.vmem [shape: f32[1,1,128], index: 4, kind: output, shape index: {2}]
  %5 = xla_tuple %s2, %s3, %s4
  %s6 = sld [smem:[#allocation0]]
  $region38: #{dice_loss.1} parent=0
    _
  %s8 = ssub.s32 1, %s6
  %s9 = scalar_select 0, %s8, %s6
  // Predicated region
  $region2: #{dice_loss.1} parent=0 // pred_check
    _
  $region3: #{dice_loss.1} parent=0 // pred_check_branch
    %11 = sbr.rel (0) target = $region5
  $region4: #{dice_loss.1} parent=0 // pred_region
    %s12 = sadd.s32 0, 0
    %p13 = scmp.lt.s32.totalorder %s12, 0
    %s14 = scalar_select %p13, %s12, 0
    %s15 = smul.u32 2, %s14
    %p16 = scmp.lt.s32.totalorder %s15, 1
    %s17 = scalar_select %p16, %s15, 1
    %s18 = smul.addr %s17, 8
    %s19 = scalar_lea.vmem %s0, %s18
    %s20 = sadd.s32 0, 0
    %p21 = scmp.lt.s32.totalorder %s20, 0
    %s22 = scalar_select %p21, %s20, 0
    %s23 = smul.u32 2, %s22
  $region5: #{dice_loss.1} parent=0 // pred_fallthru
    _
  // Predicated region
  $region6: #{dice_loss.1} parent=0 // pred_check
    _
  $region7: #{dice_loss.1} parent=0 // pred_check_branch
    %25 = sbr.rel (0) target = $region9
  $region8: #{dice_loss.1} parent=0 // pred_region
    %s26 = sadd.s32 0, 0
    %p27 = scmp.lt.s32.totalorder %s26, 0
    %s28 = scalar_select %p27, %s26, 0
    %s29 = smul.u32 2, %s28
    %p30 = scmp.lt.s32.totalorder %s29, 1
    %s31 = scalar_select %p30, %s29, 1
    %s32 = smul.addr %s31, 8
    %s33 = scalar_lea.vmem %s1, %s32
    %s34 = sadd.s32 0, 0
    %p35 = scmp.lt.s32.totalorder %s34, 0
    %s36 = scalar_select %p35, %s34, 0
    %s37 = smul.u32 2, %s36
  $region9: #{dice_loss.1} parent=0 // pred_fallthru
    _
  %s38 = sadd.s32 0, 0
  %p39 = scmp.lt.s32.totalorder %s38, 0
  %s40 = scalar_select %p39, %s38, 0
  %s41 = smul.u32 2, %s40
  %p42 = scmp.lt.s32.totalorder %s41, 1
  %s43 = scalar_select %p42, %s41, 1
  %s44 = smul.addr %s43, 8
  %s45 = scalar_lea.vmem %s0, %s44
  %s46 = sadd.s32 0, 0
  %p47 = scmp.lt.s32.totalorder %s46, 0
  %s48 = scalar_select %p47, %s46, 0
  %s49 = smul.u32 2, %s48
  %p50 = scmp.lt.s32.totalorder %s49, 1
  %s51 = scalar_select %p50, %s49, 1
  %s52 = smul.addr %s51, 8
  %s53 = scalar_lea.vmem %s1, %s52
  %s54 = sadd.s32 0, 0
  %p55 = scmp.lt.s32.totalorder %s54, 0
  %s56 = scalar_select %p55, %s54, 0
  %s57 = smul.u32 2, %s56
  %p58 = scmp.lt.s32.totalorder %s57, 1
  %s59 = scalar_select %p58, %s57, 1
  %s60 = smul.addr %s59, 8
  %s61 = scalar_lea.vmem %s0, %s60
  %s62 = sadd.s32 0, 0
  %p63 = scmp.lt.s32.totalorder %s62, 0
  %s64 = scalar_select %p63, %s62, 0
  %s65 = smul.u32 2, %s64
  %s66 = sadd.s32 0, 0
  %p67 = scmp.lt.s32.totalorder %s66, 0
  %s68 = scalar_select %p67, %s66, 0
  %s69 = smul.u32 2, %s68
  %p70 = scmp.lt.s32.totalorder %s69, 1
  %s71 = scalar_select %p70, %s69, 1
  %s72 = smul.addr %s71, 8
  %s73 = scalar_lea.vmem %s1, %s72
  %s74 = sadd.s32 0, 0
  %p75 = scmp.lt.s32.totalorder %s74, 0
  %s76 = scalar_select %p75, %s74, 0
  %s77 = smul.u32 2, %s76
  %p78 = scmp.eq.s32.totalorder 0, 0
  // Predicated region
  $region10: #{dice_loss.1} parent=0 // pred_check
    %p79 = pneg %p78
  $region11: #{dice_loss.1} parent=0 // pred_check_branch
    %81 = sbr.rel (%p79) target = $region13
  $region12: #{dice_loss.1} parent=0 // pred_region
    %82 = vst [vmem:[%s2] sm:$0x1] 0.0
    %83 = vst [vmem:[%s3] sm:$0x1] 0.0
    %84 = vst [vmem:[%s4] sm:$0x1] 0.0
  $region13: #{dice_loss.1} parent=0 // pred_fallthru
    _
  %v85 = vld [vmem:[%s61] sm:$0xff]
  %v86 = vld [vmem:[%s61 + $0x8] sm:$0xff]
  %v87 = vmul.f32 %v85, 0.5
  %v88 = vmul.f32 %v86, 0.5
  %v89 = vtanh.pop %v87
  %v90 = vtanh.pop %v88
  %v91 = vld [vmem:[%s73] sm:$0xff]
  %v92 = vld [vmem:[%s73 + $0x8] sm:$0xff]
  %v93 = vld [vmem:[%s2] sm:$0x1]
  %v94 = vadd.f32 %v89, %v90
  %v95 = vrot.slane %v94, 4
  %v96 = vadd.f32 %v94, %v95
  %v97 = vrot.slane %v96, 2
  %v98 = vadd.f32 %v96, %v97
  %v99 = vrot.slane %v98, 1
  %v100 = vadd.f32 %v98, %v99
  %v101 = vadd.f32 %v93, %v100
  %102 = vst [vmem:[%s2] sm:$0x1] %v101
  %v103 = vld [vmem:[%s3] sm:$0x1]
  %v104 = vmul.f32 %v89, %v91
  %v105 = vmul.f32 %v90, %v92
  %v106 = vadd.f32 %v104, %v105
  %v107 = vrot.slane %v106, 4
  %v108 = vadd.f32 %v106, %v107
  %v109 = vrot.slane %v108, 2
  %v110 = vadd.f32 %v108, %v109
  %v111 = vrot.slane %v110, 1
  %v112 = vadd.f32 %v110, %v111
  %v113 = vadd.f32 %v103, %v112
  %114 = vst [vmem:[%s3] sm:$0x1] %v113
  %v115 = vld [vmem:[%s4] sm:$0x1]
  %v116 = vadd.f32 %v91, %v92
  %v117 = vrot.slane %v116, 4
  %v118 = vadd.f32 %v116, %v117
  %v119 = vrot.slane %v118, 2
  %v120 = vadd.f32 %v118, %v119
  %v121 = vrot.slane %v120, 1
  %v122 = vadd.f32 %v120, %v121
  %v123 = vadd.f32 %v115, %v122
  %124 = vst [vmem:[%s4] sm:$0x1] %v123
  // Predicated region
  $region14: #{dice_loss.1} parent=0 // pred_check
    _
  $region15: #{dice_loss.1} parent=0 // pred_check_branch
    %126 = sbr.rel (0) target = $region17
  $region16: #{dice_loss.1} parent=0 // pred_region
    _
  $region17: #{dice_loss.1} parent=0 // pred_fallthru
    _
  // Predicated region
  $region18: #{dice_loss.1} parent=0 // pred_check
    _
  $region19: #{dice_loss.1} parent=0 // pred_check_branch
    %128 = sbr.rel (0) target = $region21
  $region20: #{dice_loss.1} parent=0 // pred_region
    _
  $region21: #{dice_loss.1} parent=0 // pred_fallthru
    _
  // Predicated region
  $region22: #{dice_loss.1} parent=0 // pred_check
    _
  $region23: #{dice_loss.1} parent=0 // pred_check_branch
    %130 = sbr.rel (0) target = $region25
  $region24: #{dice_loss.1} parent=0 // pred_region
    _
  $region25: #{dice_loss.1} parent=0 // pred_fallthru
    _
  // Predicated region
  $region26: #{dice_loss.1} parent=0 // pred_check
    _
  $region27: #{dice_loss.1} parent=0 // pred_check_branch
    %132 = sbr.rel (0) target = $region29
  $region28: #{dice_loss.1} parent=0 // pred_region
    _
  $region29: #{dice_loss.1} parent=0 // pred_fallthru
    _
  // Predicated region
  $region30: #{dice_loss.1} parent=0 // pred_check
    _
  $region31: #{dice_loss.1} parent=0 // pred_check_branch
    %134 = sbr.rel (0) target = $region33
  $region32: #{dice_loss.1} parent=0 // pred_region
    _
  $region33: #{dice_loss.1} parent=0 // pred_fallthru
    _
  // Predicated region
  $region34: #{dice_loss.1} parent=0 // pred_check
    _
  $region35: #{dice_loss.1} parent=0 // pred_check_branch
    %136 = sbr.rel (0) target = $region37
  $region36: #{dice_loss.1} parent=0 // pred_region
    _
  $region37: #{dice_loss.1} parent=0 // pred_fallthru
    _

</llo_original>
